<compile_context>
chip_gen: v5e
topology: v5e:2x2
jax: 0.10.0
libtpu: 0.0.40
codegen_flags: <defaults>
</compile_context>

<pallas_src>
import math
import functools

import jax
import jax.numpy as jnp
from jax.experimental import pallas as pl
from jax.experimental.pallas import tpu as pltpu


def _cheb_weighted_sum(x, w):
    """sum_k w[k] * T_k(x) via the Chebyshev recurrence (w: list of scalars)."""
    order = len(w) - 1
    t_prev = jnp.ones_like(x)                    # T_0
    acc = w[0] * t_prev
    if order >= 1:
        t_cur = x                                # T_1
        acc = acc + w[1] * t_cur
        for k in range(2, order + 1):
            t_next = 2.0 * x * t_cur - t_prev    # T_k
            acc = acc + w[k] * t_next
            t_prev, t_cur = t_cur, t_next
    return acc


def _habit_kernel(w_ref, s_ref, lam_ref, v_ref, nu_ref, out_ref, *,
                  order, s_lower, s_upper, s_bar, phi, g, beta, gamma):
    # Hoist the diagonal weights out of SMEM once (no repeated sld+broadcast).
    w = [w_ref[k] for k in range(order + 1)]

    s = s_ref[...]                                           # (1, n_blk)
    lam = lam_ref[...]                                       # (1, n_blk)
    v = v_ref[...]                                           # (1, n_blk)
    nu = nu_ref[...].astype(jnp.float32)                     # (B, n_blk)

    s_prime = (1.0 - phi) * s_bar + phi * s + lam * nu
    s_prime = jnp.clip(s_prime, s_lower, s_upper)

    inv_half = 2.0 / (s_upper - s_lower)
    x1 = (s_prime - s_lower) * inv_half - 1.0
    v_prime = _cheb_weighted_sum(x1, w)                      # (B, n_blk)

    # Fused exponential:
    #   M * exp(g + nu) = beta * exp((1 - gamma)*(g + nu) - gamma*(s' - s))
    expo = (1.0 - gamma) * (g + nu) - gamma * (s_prime - s)
    diff = beta * jnp.exp(expo) * (v_prime + 1.0) - v        # (B, n_blk)

    out_ref[...] = jnp.mean(diff, axis=0, keepdims=True)     # (1, n_blk)


def _pick_n_blk(B, N, *, max_lanes=8192, nu_buf_budget_bytes=8 << 20):
    """Largest lane-block that divides N, fits double-buffered nu in VMEM,
    and (when N allows) keeps >= 2 grid blocks for v7x 2-TC sharding."""
    assert N % 128 == 0, "N must be a multiple of 128"
    best = 128
    for c in range(128, min(N, max_lanes) + 1, 128):
        if N % c != 0:
            continue
        if 2 * B * c * 4 > nu_buf_budget_bytes:        # double-buffered nu tile
            continue
        if N >= 256 and N // c < 2:                    # keep both v7x cores busy
            continue
        best = c
    return best


def cc_habit_forward(nu, diag_w, *, s_lower, order, S_bar=0.057, phi=0.87,
                     g=1.89 / 100, beta=0.89, gamma=2.0, n_blk=None):
    """Pallas implementation of CCHabitModel.forward (save=False)."""
    B, N = nu.shape
    s_bar = math.log(S_bar)
    s_upper = s_bar + (1.0 - S_bar ** 2) / 2.0

    if n_blk is None:
        n_blk = _pick_n_blk(B, N)
    assert N % n_blk == 0, "N must be divisible by the lane block size"

    # ---- column-only quantities, computed once (exact linspace endpoints) ----
    S = jnp.linspace(math.exp(s_lower), math.exp(s_upper), N, dtype=jnp.float32)
    s = jnp.log(S)
    x0 = 2.0 * (s - s_lower) / (s_upper - s_lower) - 1.0
    w_list = [diag_w[k] for k in range(order + 1)]
    v = _cheb_weighted_sum(x0, w_list)
    lam = (1.0 / S_bar) * jnp.sqrt(1.0 - 2.0 * (s - s_bar)) - 1.0

    s_in = s.reshape(1, N).astype(jnp.float32)
    lam_in = lam.reshape(1, N).astype(jnp.float32)
    v_in = v.reshape(1, N).astype(jnp.float32)

    kernel = functools.partial(
        _habit_kernel,
        order=order,
        s_lower=float(s_lower), s_upper=float(s_upper), s_bar=float(s_bar),
        phi=float(phi), g=float(g), beta=float(beta), gamma=float(gamma),
    )

    row_spec = pl.BlockSpec((1, n_blk), lambda j: (0, j))
    out = pl.pallas_call(
        kernel,
        out_shape=jax.ShapeDtypeStruct((1, N), jnp.float32),
        grid=(N // n_blk,),
        in_specs=[
            pl.BlockSpec(memory_space=pltpu.MemorySpace.SMEM),   # diag weights
            row_spec,                                            # s
            row_spec,                                            # lam
            row_spec,                                            # v
            pl.BlockSpec((B, n_blk), lambda j: (0, j)),          # nu block
        ],
        out_specs=row_spec,
        compiler_params=pltpu.CompilerParams(
            dimension_semantics=("parallel",)),
    )(diag_w, s_in, lam_in, v_in, nu)
    return out.reshape(N)


def _reference_forward(nu, diag_w, *, s_lower, order, S_bar=0.057, phi=0.87,
                       g=1.89 / 100, beta=0.89, gamma=2.0):
    """Pure-JAX reference matching the PyTorch forward (save=False)."""
    B, N = nu.shape
    s_bar = math.log(S_bar)
    s_upper = s_bar + (1.0 - S_bar ** 2) / 2.0
    S = jnp.linspace(math.exp(s_lower), math.exp(s_upper), N, dtype=jnp.float32)
    s = jnp.log(S)

    w_list = [diag_w[k] for k in range(order + 1)]
    x0 = 2.0 * (s - s_lower) / (s_upper - s_lower) - 1.0
    v = _cheb_weighted_sum(x0, w_list)
    lam = (1.0 / S_bar) * jnp.sqrt(1.0 - 2.0 * (s - s_bar)) - 1.0
    s_prime = (1.0 - phi) * s_bar + phi * s + lam * nu
    s_prime = jnp.clip(s_prime, s_lower, s_upper)
    x1 = 2.0 * (s_prime - s_lower) / (s_upper - s_lower) - 1.0
    v_prime = _cheb_weighted_sum(x1, w_list)
    M = beta * jnp.exp(-gamma * (s_prime - s + g + nu))
    diff = M * jnp.exp(g + nu) * (v_prime + 1.0) - v
    return jnp.mean(diff, axis=0)


if __name__ == "__main__":
    # Model config (small, consistent with the module's forward).
    order = 4
    s_lower = math.log(0.02)        # below s_bar = log(0.057)
    B, N = 8, 256

    key = jax.random.PRNGKey(0)
    k_w, k_nu = jax.random.split(key)

    # nn.Linear(order+1, order+1, bias=False) weight, then masked to diagonal.
    fan_in = order + 1
    bound = 1.0 / math.sqrt(fan_in)
    W = jax.random.uniform(k_w, (order + 1, order + 1), dtype=jnp.float32,
                           minval=-bound, maxval=bound)
    diag_w = jnp.diag(W)                       # diagonal weights, shape (order+1,)

    # Small consumption shocks nu of shape (batch, N).
    nu = 0.01 * jax.random.normal(k_nu, (B, N), dtype=jnp.float32)

    out = cc_habit_forward(nu, diag_w, s_lower=s_lower, order=order)
    out = jax.block_until_ready(out)

    ref = _reference_forward(nu, diag_w, s_lower=s_lower, order=order)
    assert out.shape == (N,)
    assert bool(jnp.all(jnp.isfinite(out)))
    assert bool(jnp.allclose(out, ref, rtol=1e-5, atol=1e-5))

    print("KERNEL_OK")
</pallas_src>

<mosaic_0001>
module attributes {stable_mosaic.version = 11 : i64} {
  func.func @_habit_kernel(%arg0: i32, %arg1: memref<5xf32, #tpu.memory_space<smem>>, %arg2: memref<1x128xf32, #tpu.memory_space<vmem>>, %arg3: memref<1x128xf32, #tpu.memory_space<vmem>>, %arg4: memref<1x128xf32, #tpu.memory_space<vmem>>, %arg5: memref<8x128xf32, #tpu.memory_space<vmem>>, %arg6: memref<1x128xf32, #tpu.memory_space<vmem>>) attributes {dimension_semantics = [#tpu.dimension_semantics<parallel>], iteration_bounds = array<i64: 2>, scalar_prefetch = 0 : i64, scratch_operands = 0 : i64, tpu.core_type = #tpu.core_type<tc>, window_params = [{transform_indices = @transform_0, window_bounds = array<i64: 5>}, {transform_indices = @transform_1, window_bounds = array<i64: 1, 128>}, {transform_indices = @transform_2, window_bounds = array<i64: 1, 128>}, {transform_indices = @transform_3, window_bounds = array<i64: 1, 128>}, {transform_indices = @transform_4, window_bounds = array<i64: 8, 128>}, {transform_indices = @transform_5, window_bounds = array<i64: 1, 128>}]} {
    %c0 = arith.constant 0 : index
    %0 = memref.load %arg1[%c0] : memref<5xf32, #tpu.memory_space<smem>>
    %c1 = arith.constant 1 : index
    %1 = memref.load %arg1[%c1] : memref<5xf32, #tpu.memory_space<smem>>
    %c2 = arith.constant 2 : index
    %2 = memref.load %arg1[%c2] : memref<5xf32, #tpu.memory_space<smem>>
    %c3 = arith.constant 3 : index
    %3 = memref.load %arg1[%c3] : memref<5xf32, #tpu.memory_space<smem>>
    %c4 = arith.constant 4 : index
    %4 = memref.load %arg1[%c4] : memref<5xf32, #tpu.memory_space<smem>>
    %c0_0 = arith.constant 0 : index
    %c0_1 = arith.constant 0 : index
    %5 = vector.load %arg2[%c0_0, %c0_1] : memref<1x128xf32, #tpu.memory_space<vmem>>, vector<1x128xf32>
    %c0_2 = arith.constant 0 : index
    %c0_3 = arith.constant 0 : index
    %6 = vector.load %arg3[%c0_2, %c0_3] : memref<1x128xf32, #tpu.memory_space<vmem>>, vector<1x128xf32>
    %c0_4 = arith.constant 0 : index
    %c0_5 = arith.constant 0 : index
    %7 = vector.load %arg4[%c0_4, %c0_5] : memref<1x128xf32, #tpu.memory_space<vmem>>, vector<1x128xf32>
    %c0_6 = arith.constant 0 : index
    %c0_7 = arith.constant 0 : index
    %8 = vector.load %arg5[%c0_6, %c0_7] : memref<8x128xf32, #tpu.memory_space<vmem>>, vector<8x128xf32>
    %cst = arith.constant 8.700000e-01 : f32
    %9 = vector.broadcast %cst : f32 to vector<1x128xf32>
    %10 = arith.mulf %9, %5 : vector<1x128xf32>
    %cst_8 = arith.constant -0.372411519 : f32
    %11 = vector.broadcast %cst_8 : f32 to vector<1x128xf32>
    %12 = arith.addf %11, %10 : vector<1x128xf32>
    %13 = vector.broadcast %6 : vector<1x128xf32> to vector<8x128xf32>
    %14 = arith.mulf %13, %8 : vector<8x128xf32>
    %15 = vector.broadcast %12 : vector<1x128xf32> to vector<8x128xf32>
    %16 = arith.addf %15, %14 : vector<8x128xf32>
    %cst_9 = arith.constant -3.91202307 : f32
    %cst_10 = arith.constant -2.36632848 : f32
    %17 = vector.broadcast %cst_9 : f32 to vector<8x128xf32>
    %18 = arith.maximumf %17, %16 : vector<8x128xf32>
    %19 = vector.broadcast %cst_10 : f32 to vector<8x128xf32>
    %20 = arith.minimumf %19, %18 : vector<8x128xf32>
    %cst_11 = arith.constant -3.91202307 : f32
    %21 = vector.broadcast %cst_11 : f32 to vector<8x128xf32>
    %22 = arith.subf %20, %21 : vector<8x128xf32>
    %cst_12 = arith.constant 1.2939167 : f32
    %23 = vector.broadcast %cst_12 : f32 to vector<8x128xf32>
    %24 = arith.mulf %22, %23 : vector<8x128xf32>
    %cst_13 = arith.constant 1.000000e+00 : f32
    %25 = vector.broadcast %cst_13 : f32 to vector<8x128xf32>
    %26 = arith.subf %24, %25 : vector<8x128xf32>
    %cst_14 = arith.constant 1.000000e+00 : f32
    %27 = vector.broadcast %cst_14 : f32 to vector<8x128xf32>
    %28 = vector.broadcast %0 : f32 to vector<8x128xf32>
    %29 = arith.mulf %28, %27 : vector<8x128xf32>
    %30 = vector.broadcast %1 : f32 to vector<8x128xf32>
    %31 = arith.mulf %30, %26 : vector<8x128xf32>
    %32 = arith.addf %29, %31 : vector<8x128xf32>
    %cst_15 = arith.constant 2.000000e+00 : f32
    %33 = vector.broadcast %cst_15 : f32 to vector<8x128xf32>
    %34 = arith.mulf %33, %26 : vector<8x128xf32>
    %35 = arith.mulf %34, %26 : vector<8x128xf32>
    %36 = arith.subf %35, %27 : vector<8x128xf32>
    %37 = vector.broadcast %2 : f32 to vector<8x128xf32>
    %38 = arith.mulf %37, %36 : vector<8x128xf32>
    %39 = arith.addf %32, %38 : vector<8x128xf32>
    %cst_16 = arith.constant 2.000000e+00 : f32
    %40 = vector.broadcast %cst_16 : f32 to vector<8x128xf32>
    %41 = arith.mulf %40, %26 : vector<8x128xf32>
    %42 = arith.mulf %41, %36 : vector<8x128xf32>
    %43 = arith.subf %42, %26 : vector<8x128xf32>
    %44 = vector.broadcast %3 : f32 to vector<8x128xf32>
    %45 = arith.mulf %44, %43 : vector<8x128xf32>
    %46 = arith.addf %39, %45 : vector<8x128xf32>
    %cst_17 = arith.constant 2.000000e+00 : f32
    %47 = vector.broadcast %cst_17 : f32 to vector<8x128xf32>
    %48 = arith.mulf %47, %26 : vector<8x128xf32>
    %49 = arith.mulf %48, %43 : vector<8x128xf32>
    %50 = arith.subf %49, %36 : vector<8x128xf32>
    %51 = vector.broadcast %4 : f32 to vector<8x128xf32>
    %52 = arith.mulf %51, %50 : vector<8x128xf32>
    %53 = arith.addf %46, %52 : vector<8x128xf32>
    %cst_18 = arith.constant 1.890000e-02 : f32
    %54 = vector.broadcast %cst_18 : f32 to vector<8x128xf32>
    %55 = arith.addf %54, %8 : vector<8x128xf32>
    %cst_19 = arith.constant -1.000000e+00 : f32
    %56 = vector.broadcast %cst_19 : f32 to vector<8x128xf32>
    %57 = arith.mulf %56, %55 : vector<8x128xf32>
    %58 = vector.broadcast %5 : vector<1x128xf32> to vector<8x128xf32>
    %59 = arith.subf %20, %58 : vector<8x128xf32>
    %cst_20 = arith.constant 2.000000e+00 : f32
    %60 = vector.broadcast %cst_20 : f32 to vector<8x128xf32>
    %61 = arith.mulf %60, %59 : vector<8x128xf32>
    %62 = arith.subf %57, %61 : vector<8x128xf32>
    %63 = math.exp %62 : vector<8x128xf32>
    %cst_21 = arith.constant 0.889999985 : f32
    %64 = vector.broadcast %cst_21 : f32 to vector<8x128xf32>
    %65 = arith.mulf %64, %63 : vector<8x128xf32>
    %cst_22 = arith.constant 1.000000e+00 : f32
    %66 = vector.broadcast %cst_22 : f32 to vector<8x128xf32>
    %67 = arith.addf %53, %66 : vector<8x128xf32>
    %68 = arith.mulf %65, %67 : vector<8x128xf32>
    %69 = vector.broadcast %7 : vector<1x128xf32> to vector<8x128xf32>
    %70 = arith.subf %68, %69 : vector<8x128xf32>
    %cst_23 = arith.constant dense<0.000000e+00> : vector<128xf32>
    %71 = vector.multi_reduction <add>, %70, %cst_23 [0] : vector<8x128xf32> to vector<128xf32>
    %72 = vector.shape_cast %71 : vector<128xf32> to vector<1x128xf32>
    %cst_24 = arith.constant 8.000000e+00 : f32
    %73 = vector.broadcast %cst_24 : f32 to vector<1x128xf32>
    %74 = arith.divf %72, %73 : vector<1x128xf32>
    %c0_25 = arith.constant 0 : index
    %c0_26 = arith.constant 0 : index
    %75 = vector.load %arg6[%c0_25, %c0_26] : memref<1x128xf32, #tpu.memory_space<vmem>>, vector<1x128xf32>
    tpu.vector_store %arg6[%c0_25, %c0_26], %74 {strides = array<i32>} : memref<1x128xf32, #tpu.memory_space<vmem>>, vector<1x128xf32>,
    return
  }
  func.func @transform_0(%arg0: i32) -> i32 {
    %c0_i32 = arith.constant 0 : i32
    %c0_i32_0 = arith.constant 0 : i32
    return %c0_i32 : i32
  }
  func.func @transform_1(%arg0: i32) -> (i32, i32) {
    %c0_i32 = arith.constant 0 : i32
    %c0_i32_0 = arith.constant 0 : i32
    return %c0_i32, %arg0 : i32, i32
  }
  func.func @transform_2(%arg0: i32) -> (i32, i32) {
    %c0_i32 = arith.constant 0 : i32
    %c0_i32_0 = arith.constant 0 : i32
    return %c0_i32, %arg0 : i32, i32
  }
  func.func @transform_3(%arg0: i32) -> (i32, i32) {
    %c0_i32 = arith.constant 0 : i32
    %c0_i32_0 = arith.constant 0 : i32
    return %c0_i32, %arg0 : i32, i32
  }
  func.func @transform_4(%arg0: i32) -> (i32, i32) {
    %c0_i32 = arith.constant 0 : i32
    %c0_i32_0 = arith.constant 0 : i32
    return %c0_i32, %arg0 : i32, i32
  }
  func.func @transform_5(%arg0: i32) -> (i32, i32) {
    %c0_i32 = arith.constant 0 : i32
    %c0_i32_0 = arith.constant 0 : i32
    return %c0_i32, %arg0 : i32, i32
  }
}

</mosaic_0001>

<llo_original>
// kernel: tpu_custom_call.1
$region0: #{tpu_custom_call.1}
  #allocation0 [shape = 'u32[]', space=smem, size = 0x4, offset = 0x4, fixed_abs, tag = 'smem constant byte address 0x4 - core index']
  #allocation1 [shape = 'u32[72,128]{1,0:T(1,128)}', space=vmem, size = 0x9000, scoped, tag = 'internal scratch']
  %s0 = inlined_call_operand.hbm [shape: f32[5], index: 0, kind: input, shape index: {}]
  %s1 = inlined_call_operand.hbm [shape: f32[1,256], index: 1, kind: input, shape index: {}]
  %s2 = inlined_call_operand.hbm [shape: f32[1,256], index: 2, kind: input, shape index: {}]
  %s3 = inlined_call_operand.vmem [shape: f32[1,256], index: 3, kind: input, shape index: {}]
  %s4 = inlined_call_operand.hbm [shape: f32[8,256], index: 4, kind: input, shape index: {}]
  %s5 = inlined_call_operand.hbm [shape: f32[1,256], index: 5, kind: output, shape index: {}]
  %s6 = sld [smem:[#allocation0]]
  $region69: #{tpu_custom_call.1} parent=0
    _
  %s8 = ssub.s32 1, %s6
  %s9 = scalar_select 0, %s8, %s6
  $region1: #{tpu_custom_call.1} parent=0
    #allocation2 [shape = 'u8[512]{0}', space=smem, size = 0x200, scoped, tag = 'input window, operand 0, single buffered']
    #allocation3 [shape = 's32[2]{0}', space=sflag, size = 0x8, scoped, tag = 'scoped memory for tpu_custom_call.1']
    #allocation4 [shape = 's32[2]{0}', space=sflag, size = 0x8, scoped, tag = 'scoped memory for tpu_custom_call.1']
    #allocation5 [shape = 's32[2]{0}', space=sflag, size = 0x8, scoped, tag = 'scoped memory for tpu_custom_call.1']
    #allocation6 [shape = 'u8[1024]{0}', space=vmem, size = 0x400, scoped, tag = 'input window, operand 1']
    #allocation7 [shape = 'u8[1024]{0}', space=vmem, size = 0x400, scoped, tag = 'input window, operand 2']
    #allocation8 [shape = 's32[2]{0}', space=sflag, size = 0x8, scoped, tag = 'scoped memory for tpu_custom_call.1']
    #allocation9 [shape = 'u8[8192]{0}', space=vmem, size = 0x2000, scoped, tag = 'input window, operand 4']
    #allocation10 [shape = 'u8[1024]{0}', space=vmem, size = 0x400, scoped, tag = 'output window, operand 0']
    %10 = vsyncpa [#allocation5], 0
    %11 = vsyncpa [#allocation3], 0
    %s12 = scalar_lea.sflag [#allocation3], 1
    %13 = vsyncpa %s12, 0
    %14 = vsyncpa [#allocation8], 0
    %s15 = scalar_lea.sflag [#allocation8], 1
    %16 = vsyncpa %s15, 0
    %17 = vsyncpa [#allocation4], 0
    %s18 = scalar_lea.sflag [#allocation4], 1
    %19 = vsyncpa %s18, 0
    loop: start=0, step=1, limit=4
    $region2: #{tpu_custom_call.1} parent=1 // loop_pre_header
      _
    $region3: #{tpu_custom_call.1} parent=1 // loop_header
      %s21 = sphi 0, %s25
      %p22 = scmp.ge.s32.totalorder %s21, 4
      %s29 = sphi 0, %s29
      %s31 = sphi 0, %s29
      %s32 = sphi 0, %s31
      %s46 = sphi 0, %s32
      %s52 = sphi 0, %s54
      %s55 = sphi 0, %s52
      %s56 = sphi 0, %s55
      %s72 = sphi 0, %s56
      %s78 = sphi 0, %s80
      %s81 = sphi 0, %s78
      %s82 = sphi 0, %s81
      %s98 = sphi 0, %s82
      %s104 = sphi 0, %s106
      %s107 = sphi 0, %s104
      %s108 = sphi 0, %s107
      %s124 = sphi 0, %s108
      %s130 = sphi 0, %s132
      %s133 = sphi 0, %s130
      %s134 = sphi 0, %s133
      %s150 = sphi 0, %s134
      %s156 = sphi 0, %s158
      %s159 = sphi 0, %s156
      %s160 = sphi 0, %s159
      %s176 = sphi 0, %s160
    $region4: #{tpu_custom_call.1} parent=1 // loop_header_branch
      %24 = sbr.rel (%p22) target = $region8
    $region5: #{tpu_custom_call.1} parent=1 // loop_body
      %s26 = ssub.s32 %s21, 1
      %s27 = ssub.s32 %s21, 2
      %s28 = sadd.s32 %s21, 1
      %s30 = sadd.s32 %s29, 1
      %p33 = scmp.eq.s32.totalorder %s21, 1
      %p34 = scmp.ne.s32.totalorder %s29, %s31
      %p35 = scmp.eq.s32.totalorder %s21, 0
      %p36 = por %p34, %p35
      %p37 = scmp.ne.s32.totalorder %s29, %s31
      %p38 = scmp.eq.s32.totalorder %s26, 1
      %p39 = por %p37, %p38
      %p40 = scmp.ne.s32.totalorder %s31, %s32
      %p41 = scmp.eq.s32.totalorder %s26, 0
      %p42 = por %p40, %p41
      %p43 = scmp.ne.s32.totalorder %s31, %s32
      %p44 = scmp.eq.s32.totalorder %s27, 1
      %p45 = por %p43, %p44
      %p47 = scmp.ne.s32.totalorder %s32, %s46
      %p48 = scmp.eq.s32.totalorder %s27, 0
      %p49 = por %p47, %p48
      %s50 = ssub.s32 %s21, %s28
      %p51 = scmp.eq.s32.totalorder %s50, 0
      %s53 = sadd.s32 %s52, 1
      %s54 = scalar_select %p51, %s52, %s53
      %p57 = pneg %p51
      %p58 = scmp.eq.s32.totalorder %s21, 1
      %p59 = por %p57, %p58
      %p60 = scmp.ne.s32.totalorder %s52, %s55
      %p61 = scmp.eq.s32.totalorder %s21, 0
      %p62 = por %p60, %p61
      %p63 = scmp.ne.s32.totalorder %s52, %s55
      %p64 = scmp.eq.s32.totalorder %s26, 1
      %p65 = por %p63, %p64
      %p66 = scmp.ne.s32.totalorder %s55, %s56
      %p67 = scmp.eq.s32.totalorder %s26, 0
      %p68 = por %p66, %p67
      %p69 = scmp.ne.s32.totalorder %s55, %s56
      %p70 = scmp.eq.s32.totalorder %s27, 1
      %p71 = por %p69, %p70
      %p73 = scmp.ne.s32.totalorder %s56, %s72
      %p74 = scmp.eq.s32.totalorder %s27, 0
      %p75 = por %p73, %p74
      %s76 = ssub.s32 %s21, %s28
      %p77 = scmp.eq.s32.totalorder %s76, 0
      %s79 = sadd.s32 %s78, 1
      %s80 = scalar_select %p77, %s78, %s79
      %p83 = pneg %p77
      %p84 = scmp.eq.s32.totalorder %s21, 1
      %p85 = por %p83, %p84
      %p86 = scmp.ne.s32.totalorder %s78, %s81
      %p87 = scmp.eq.s32.totalorder %s21, 0
      %p88 = por %p86, %p87
      %p89 = scmp.ne.s32.totalorder %s78, %s81
      %p90 = scmp.eq.s32.totalorder %s26, 1
      %p91 = por %p89, %p90
      %p92 = scmp.ne.s32.totalorder %s81, %s82
      %p93 = scmp.eq.s32.totalorder %s26, 0
      %p94 = por %p92, %p93
      %p95 = scmp.ne.s32.totalorder %s81, %s82
      %p96 = scmp.eq.s32.totalorder %s27, 1
      %p97 = por %p95, %p96
      %p99 = scmp.ne.s32.totalorder %s82, %s98
      %p100 = scmp.eq.s32.totalorder %s27, 0
      %p101 = por %p99, %p100
      %s102 = ssub.s32 %s21, %s28
      %p103 = scmp.eq.s32.totalorder %s102, 0
      %s105 = sadd.s32 %s104, 1
      %s106 = scalar_select %p103, %s104, %s105
      %p109 = pneg %p103
      %p110 = scmp.eq.s32.totalorder %s21, 1
      %p111 = por %p109, %p110
      %p112 = scmp.ne.s32.totalorder %s104, %s107
      %p113 = scmp.eq.s32.totalorder %s21, 0
      %p114 = por %p112, %p113
      %p115 = scmp.ne.s32.totalorder %s104, %s107
      %p116 = scmp.eq.s32.totalorder %s26, 1
      %p117 = por %p115, %p116
      %p118 = scmp.ne.s32.totalorder %s107, %s108
      %p119 = scmp.eq.s32.totalorder %s26, 0
      %p120 = por %p118, %p119
      %p121 = scmp.ne.s32.totalorder %s107, %s108
      %p122 = scmp.eq.s32.totalorder %s27, 1
      %p123 = por %p121, %p122
      %p125 = scmp.ne.s32.totalorder %s108, %s124
      %p126 = scmp.eq.s32.totalorder %s27, 0
      %p127 = por %p125, %p126
      %s128 = ssub.s32 %s21, %s28
      %p129 = scmp.eq.s32.totalorder %s128, 0
      %s131 = sadd.s32 %s130, 1
      %s132 = scalar_select %p129, %s130, %s131
      %p135 = pneg %p129
      %p136 = scmp.eq.s32.totalorder %s21, 1
      %p137 = por %p135, %p136
      %p138 = scmp.ne.s32.totalorder %s130, %s133
      %p139 = scmp.eq.s32.totalorder %s21, 0
      %p140 = por %p138, %p139
      %p141 = scmp.ne.s32.totalorder %s130, %s133
      %p142 = scmp.eq.s32.totalorder %s26, 1
      %p143 = por %p141, %p142
      %p144 = scmp.ne.s32.totalorder %s133, %s134
      %p145 = scmp.eq.s32.totalorder %s26, 0
      %p146 = por %p144, %p145
      %p147 = scmp.ne.s32.totalorder %s133, %s134
      %p148 = scmp.eq.s32.totalorder %s27, 1
      %p149 = por %p147, %p148
      %p151 = scmp.ne.s32.totalorder %s134, %s150
      %p152 = scmp.eq.s32.totalorder %s27, 0
      %p153 = por %p151, %p152
      %s154 = ssub.s32 %s21, %s28
      %p155 = scmp.eq.s32.totalorder %s154, 0
      %s157 = sadd.s32 %s156, 1
      %s158 = scalar_select %p155, %s156, %s157
      %p161 = pneg %p155
      %p162 = scmp.eq.s32.totalorder %s21, 1
      %p163 = por %p161, %p162
      %p164 = scmp.ne.s32.totalorder %s156, %s159
      %p165 = scmp.eq.s32.totalorder %s21, 0
      %p166 = por %p164, %p165
      %p167 = scmp.ne.s32.totalorder %s156, %s159
      %p168 = scmp.eq.s32.totalorder %s26, 1
      %p169 = por %p167, %p168
      %p170 = scmp.ne.s32.totalorder %s159, %s160
      %p171 = scmp.eq.s32.totalorder %s26, 0
      %p172 = por %p170, %p171
      %p173 = scmp.ne.s32.totalorder %s159, %s160
      %p174 = scmp.eq.s32.totalorder %s27, 1
      %p175 = por %p173, %p174
      %p177 = scmp.ne.s32.totalorder %s160, %s176
      %p178 = scmp.eq.s32.totalorder %s27, 0
      %p179 = por %p177, %p178
      %p180 = scmp.le.s32.totalorder 1, %s21
      %p181 = scmp.lt.s32.totalorder %s21, 3
      %p182 = pnand %p180, %p181
      %p183 = pneg %p182
      // Predicated region
      $region9: #{tpu_custom_call.1} parent=5 // pred_check
        _
      $region10: #{tpu_custom_call.1} parent=5 // pred_check_branch
        %185 = sbr.rel (%p182) target = $region12
      $region11: #{tpu_custom_call.1} parent=5 // pred_region
        %s186 = ssub.s32 %s21, 1
        // Predicated region
        $region13: #{tpu_custom_call.1} parent=11 // pred_check
          %p187 = pneg %p42
        $region14: #{tpu_custom_call.1} parent=11 // pred_check_branch
          %189 = sbr.rel (%p187) target = $region16
        $region15: #{tpu_custom_call.1} parent=11 // pred_region
          %191 = vsyncadd [#allocation5], 0
          %s193 = sshll.u32 %s0, 4
          %s194 = int_to_ptr.hbm [resolvable:$true] %s193
          %196 = dma.hbm_to_smem %s194, 16, [#allocation2], [#allocation5]
        $region16: #{tpu_custom_call.1} parent=11 // pred_fallthru
          _
      $region12: #{tpu_custom_call.1} parent=5 // pred_fallthru
        _
      %p197 = scmp.lt.s32.totalorder %s21, 2
      // Predicated region
      $region17: #{tpu_custom_call.1} parent=5 // pred_check
        %p198 = pneg %p197
      $region18: #{tpu_custom_call.1} parent=5 // pred_check_branch
        %200 = sbr.rel (%p198) target = $region20
      $region19: #{tpu_custom_call.1} parent=5 // pred_region
        // Predicated region
        $region21: #{tpu_custom_call.1} parent=19 // pred_check
          %p201 = pneg %p62
        $region22: #{tpu_custom_call.1} parent=19 // pred_check_branch
          %203 = sbr.rel (%p201) target = $region24
        $region23: #{tpu_custom_call.1} parent=19 // pred_region
          %s204 = sand.u32 %s52, 1
          %s205 = scalar_lea.sflag [#allocation3], %s204
          %s206 = sand.u32 %s52, 1
          %s207 = scalar_lea.vmem [#allocation6], %s206
          %209 = vsyncadd %s205, 0
          %s210 = scalar_lea.hbm %s1, %s21
          %s212 = sshll.u32 %s210, 4
          %s213 = int_to_ptr.hbm [resolvable:$true] %s212
          %s214 = sshll.u32 %s207, 4
          %s215 = int_to_ptr.vmem [resolvable:$true] %s214
          %217 = dma.hbm_to_vmem [thread:$0]  %s213, 16, %s215, %s205
        $region24: #{tpu_custom_call.1} parent=19 // pred_fallthru
          _
        // Predicated region
        $region25: #{tpu_custom_call.1} parent=19 // pred_check
          %p218 = pneg %p88
        $region26: #{tpu_custom_call.1} parent=19 // pred_check_branch
          %220 = sbr.rel (%p218) target = $region28
        $region27: #{tpu_custom_call.1} parent=19 // pred_region
          %s221 = sand.u32 %s21, 1
          %s222 = scalar_lea.sflag [#allocation8], %s221
          %s223 = sand.u32 %s78, 1
          %s224 = scalar_lea.vmem [#allocation7], %s223
          %226 = vsyncadd %s222, 0
          %s227 = scalar_lea.hbm %s2, %s21
          %s229 = sshll.u32 %s227, 4
          %s230 = int_to_ptr.hbm [resolvable:$true] %s229
          %s231 = sshll.u32 %s224, 4
          %s232 = int_to_ptr.vmem [resolvable:$true] %s231
          %234 = dma.hbm_to_vmem [thread:$0]  %s230, 16, %s232, %s222
        $region28: #{tpu_custom_call.1} parent=19 // pred_fallthru
          _
        // Predicated region
        $region29: #{tpu_custom_call.1} parent=19 // pred_check
          %p235 = pneg %p114
        $region30: #{tpu_custom_call.1} parent=19 // pred_check_branch
          %237 = sbr.rel (%p235) target = $region32
        $region31: #{tpu_custom_call.1} parent=19 // pred_region
          %p238 = scmp.lt.s32.totalorder %s21, 1
          %s239 = scalar_select %p238, %s21, 1
          %s240 = scalar_lea.vmem %s3, %s239
        $region32: #{tpu_custom_call.1} parent=19 // pred_fallthru
          _
        // Predicated region
        $region33: #{tpu_custom_call.1} parent=19 // pred_check
          %p241 = pneg %p140
        $region34: #{tpu_custom_call.1} parent=19 // pred_check_branch
          %243 = sbr.rel (%p241) target = $region36
        $region35: #{tpu_custom_call.1} parent=19 // pred_region
          %s244 = sand.u32 %s21, 1
          %s245 = scalar_lea.sflag [#allocation8], %s244
          %s246 = sand.u32 %s130, 1
          %s247 = smul.addr %s246, 8
          %s248 = scalar_lea.vmem [#allocation9], %s247
          %250 = vsyncadd %s245, 0
          %s251 = smul.addr %s21, 8
          %s252 = scalar_lea.hbm %s4, %s251
          %s254 = sshll.u32 %s252, 4
          %s255 = int_to_ptr.hbm [resolvable:$true] %s254
          %s256 = sshll.u32 %s248, 4
          %s257 = int_to_ptr.vmem [resolvable:$true] %s256
          %259 = dma.hbm_to_vmem [thread:$0]  %s255, 128, %s257, %s245
        $region36: #{tpu_custom_call.1} parent=19 // pred_fallthru
          _
      $region20: #{tpu_custom_call.1} parent=5 // pred_fallthru
        _
      %p260 = scmp.le.s32.totalorder 1, %s21
      %p261 = scmp.lt.s32.totalorder %s21, 3
      %p262 = pnand %p260, %p261
      %p263 = pneg %p262
      // Predicated region
      $region37: #{tpu_custom_call.1} parent=5 // pred_check
        _
      $region38: #{tpu_custom_call.1} parent=5 // pred_check_branch
        %265 = sbr.rel (%p262) target = $region40
      $region39: #{tpu_custom_call.1} parent=5 // pred_region
        %s266 = ssub.s32 %s21, 1
        // Predicated region
        $region41: #{tpu_custom_call.1} parent=39 // pred_check
          %p267 = pneg %p42
        $region42: #{tpu_custom_call.1} parent=39 // pred_check_branch
          %269 = sbr.rel (%p267) target = $region44
        $region43: #{tpu_custom_call.1} parent=39 // pred_region
          %271 = dma.done [#allocation5], 16
        $region44: #{tpu_custom_call.1} parent=39 // pred_fallthru
          _
        %s272 = sand.u32 %s55, 1
        %s273 = scalar_lea.sflag [#allocation3], %s272
        %s274 = sand.u32 %s55, 1
        %s275 = scalar_lea.vmem [#allocation6], %s274
        // Predicated region
        $region45: #{tpu_custom_call.1} parent=39 // pred_check
          %p276 = pneg %p68
        $region46: #{tpu_custom_call.1} parent=39 // pred_check_branch
          %278 = sbr.rel (%p276) target = $region48
        $region47: #{tpu_custom_call.1} parent=39 // pred_region
          %280 = dma.done %s273, 16
        $region48: #{tpu_custom_call.1} parent=39 // pred_fallthru
          _
        %s281 = sand.u32 %s26, 1
        %s282 = scalar_lea.sflag [#allocation8], %s281
        %s283 = sand.u32 %s81, 1
        %s284 = scalar_lea.vmem [#allocation7], %s283
        // Predicated region
        $region49: #{tpu_custom_call.1} parent=39 // pred_check
          %p285 = pneg %p94
        $region50: #{tpu_custom_call.1} parent=39 // pred_check_branch
          %287 = sbr.rel (%p285) target = $region52
        $region51: #{tpu_custom_call.1} parent=39 // pred_region
          %289 = dma.done %s282, 16
        $region52: #{tpu_custom_call.1} parent=39 // pred_fallthru
          _
        %s290 = sand.u32 %s26, 1
        %s291 = scalar_lea.sflag [#allocation8], %s290
        %s292 = sand.u32 %s133, 1
        %s293 = smul.addr %s292, 8
        %s294 = scalar_lea.vmem [#allocation9], %s293
        // Predicated region
        $region53: #{tpu_custom_call.1} parent=39 // pred_check
          %p295 = pneg %p146
        $region54: #{tpu_custom_call.1} parent=39 // pred_check_branch
          %297 = sbr.rel (%p295) target = $region56
        $region55: #{tpu_custom_call.1} parent=39 // pred_region
          %299 = dma.done %s291, 128
        $region56: #{tpu_custom_call.1} parent=39 // pred_fallthru
          _
        %300 = sfence
        %p301 = pneg %p42
        %p302 = pneg %p39
        %s303 = sand.u32 %s55, 1
        %s304 = scalar_lea.sflag [#allocation3], %s303
        %s305 = sand.u32 %s55, 1
        %s306 = scalar_lea.vmem [#allocation6], %s305
        %p307 = pneg %p68
        %p308 = pneg %p65
        %s309 = sand.u32 %s26, 1
        %s310 = scalar_lea.sflag [#allocation8], %s309
        %s311 = sand.u32 %s81, 1
        %s312 = scalar_lea.vmem [#allocation7], %s311
        %p313 = pneg %p94
        %p314 = pneg %p91
        %p315 = scmp.lt.s32.totalorder %s26, 1
        %s316 = scalar_select %p315, %s26, 1
        %s317 = scalar_lea.vmem %s3, %s316
        %p318 = pneg %p120
        %p319 = pneg %p117
        %s320 = sand.u32 %s26, 1
        %s321 = scalar_lea.sflag [#allocation8], %s320
        %s322 = sand.u32 %s133, 1
        %s323 = smul.addr %s322, 8
        %s324 = scalar_lea.vmem [#allocation9], %s323
        %p325 = pneg %p146
        %p326 = pneg %p143
        %p327 = pneg %p172
        %p328 = pneg %p169
        %s329 = sand.u32 %s159, 1
        %s330 = scalar_lea.sflag [#allocation4], %s329
        %s331 = sand.u32 %s159, 1
        %s332 = scalar_lea.vmem [#allocation10], %s331
        %p333 = scmp.lt.s32.totalorder %s26, 1
        %s334 = scalar_select %p333, %s26, 1
        %s335 = scalar_lea.vmem %s3, %s334
        %s336 = sld [smem:[#allocation2]]
        %s337 = sld [smem:[#allocation2 + $0x1]]
        %s338 = sld [smem:[#allocation2 + $0x2]]
        %s339 = sld [smem:[#allocation2 + $0x3]]
        %s340 = sld [smem:[#allocation2 + $0x4]]
        %v341 = vld [vmem:[%s275] sm:$0x1]
        %v342 = vld [vmem:[%s284] sm:$0x1]
        %v343 = vld [vmem:[%s335] sm:$0x1]
        %v344 = vld [vmem:[%s294] sm:$0xff]
        %v345 = vmul.f32 %v341, 0.87
        %v346 = vadd.f32 %v345, -0.37241152
        %v348 = vperm.slane %v342, 0
        %v350 = vmul.f32 %v348, %v344
        %v352 = vperm.slane %v346, 0
        %v354 = vadd.f32 %v352, %v350
        %v355 = vmax.f32 %v354, -3.912023
        %v356 = vmin.f32 %v355, -2.3663285
        %v357 = vsub.f32 %v356, -3.912023
        %v358 = vmul.f32 %v357, 1.2939167
        %v359 = vsub.f32 %v358, 1.0
        %v360 = vstv %s336
        %v361 = vstv %s337
        %v362 = vmul.f32 %v361, %v359
        %v363 = vadd.f32 %v360, %v362
        %v364 = vmul.f32 %v359, 2.0
        %v365 = vmul.f32 %v364, %v359
        %v366 = vsub.f32 %v365, 1.0
        %v367 = vstv %s338
        %v368 = vmul.f32 %v367, %v366
        %v369 = vadd.f32 %v363, %v368
        %v370 = vmul.f32 %v364, %v366
        %v371 = vsub.f32 %v370, %v359
        %v372 = vstv %s339
        %v373 = vmul.f32 %v372, %v371
        %v374 = vadd.f32 %v369, %v373
        %v375 = vmul.f32 %v364, %v371
        %v376 = vsub.f32 %v375, %v366
        %v377 = vstv %s340
        %v378 = vmul.f32 %v377, %v376
        %v379 = vadd.f32 %v374, %v378
        %v380 = vadd.f32 %v344, 0.0189
        %v381 = vmul.f32 %v380, -1.0
        %v383 = vperm.slane %v341, 0
        %v385 = vsub.f32 %v356, %v383
        %v386 = vmul.f32 %v385, 2.0
        %v387 = vsub.f32 %v381, %v386
        %v388 = vmul.f32 %v387, 1.442695
        %v389 = vpow.pop %v388
        %v390 = vmul.f32 %v389, 0.89
        %v391 = vadd.f32 %v379, 1.0
        %v392 = vmul.f32 %v390, %v391
        %v394 = vperm.slane %v343, 0
        %v396 = vsub.f32 %v392, %v394
        %v397 = vrot.slane %v396, 4
        %v398 = vadd.f32 %v396, %v397
        %v399 = vrot.slane %v398, 2
        %v400 = vadd.f32 %v398, %v399
        %v401 = vrot.slane %v400, 1
        %v402 = vadd.f32 %v400, %v401
        %v403 = vrcp.pop 8.0
        %v404 = vmul.f32 8.0, %v403
        %v405 = vsub.f32 1.0, %v404
        %v406 = vmul.f32 %v403, %v405
        %v407 = vadd.f32 %v403, %v406
        %vm408 = vweird.f32 %v403
        %v409 = vsel %vm408, %v403, %v407
        %v410 = vmul.f32 %v402, %v409
        %411 = vst [vmem:[%s332] sm:$0x1] %v410
        %s412 = sand.u32 %s159, 1
        %s413 = scalar_lea.sflag [#allocation4], %s412
        %s414 = sand.u32 %s159, 1
        %s415 = scalar_lea.vmem [#allocation10], %s414
        // Predicated region
        $region57: #{tpu_custom_call.1} parent=39 // pred_check
          %p416 = pneg %p169
        $region58: #{tpu_custom_call.1} parent=39 // pred_check_branch
          %418 = sbr.rel (%p416) target = $region60
        $region59: #{tpu_custom_call.1} parent=39 // pred_region
          %420 = vsyncadd %s413, 0
          %s421 = scalar_lea.hbm %s5, %s26
          %s423 = sshll.u32 %s415, 4
          %s424 = int_to_ptr.vmem [resolvable:$true] %s423
          %s425 = sshll.u32 %s421, 4
          %s426 = int_to_ptr.hbm [resolvable:$true] %s425
          %428 = dma.vmem_to_hbm [thread:$0]  %s424, 16, %s426, %s413
        $region60: #{tpu_custom_call.1} parent=39 // pred_fallthru
          _
      $region40: #{tpu_custom_call.1} parent=5 // pred_fallthru
        _
      %p429 = scmp.le.s32.totalorder 2, %s21
      // Predicated region
      $region61: #{tpu_custom_call.1} parent=5 // pred_check
        %p430 = pneg %p429
      $region62: #{tpu_custom_call.1} parent=5 // pred_check_branch
        %432 = sbr.rel (%p430) target = $region64
      $region63: #{tpu_custom_call.1} parent=5 // pred_region
        %s433 = ssub.s32 %s21, 2
        // Predicated region
        $region65: #{tpu_custom_call.1} parent=63 // pred_check
          %p434 = pneg %p175
        $region66: #{tpu_custom_call.1} parent=63 // pred_check_branch
          %436 = sbr.rel (%p434) target = $region68
        $region67: #{tpu_custom_call.1} parent=63 // pred_region
          %s437 = sand.u32 %s160, 1
          %s438 = scalar_lea.sflag [#allocation4], %s437
          %s439 = sand.u32 %s160, 1
          %s440 = scalar_lea.vmem [#allocation10], %s439
          %442 = dma.done %s438, 16
        $region68: #{tpu_custom_call.1} parent=63 // pred_fallthru
          _
      $region64: #{tpu_custom_call.1} parent=5 // pred_fallthru
        _
    $region6: #{tpu_custom_call.1} parent=1 // loop_footer
      %s25 = sadd.s32 1, %s21
    $region7: #{tpu_custom_call.1} parent=1 // loop_footer_branch
      %20 = sbr.rel target = $region3
    $region8: #{tpu_custom_call.1} parent=1 // loop_exit
      _
    %443 = vsyncpa [#allocation3], 1
    %s444 = scalar_lea.sflag [#allocation3], 1
    %445 = vsyncpa %s444, 1
    %446 = vsyncpa [#allocation8], 1
    %s447 = scalar_lea.sflag [#allocation8], 1
    %448 = vsyncpa %s447, 1
    %449 = vsyncpa [#allocation4], 1
    %s450 = scalar_lea.sflag [#allocation4], 1
    %451 = vsyncpa %s450, 1
    %452 = vsyncpa [#allocation5], 1
    %s453 = scalar_lea.sflag [#allocation5], 1
    %454 = vsyncpa %s453, 1

</llo_original>
